<compile_context>
chip_gen: v7x
topology: tpu7x:2x2x1
jax: 0.10.0
libtpu: 0.0.40
codegen_flags: <defaults>
</compile_context>

<pallas_src>
import jax
import jax.numpy as jnp
from jax.experimental import pallas as pl
from jax.experimental.pallas import tpu as pltpu


# --------------------------- small helpers -----------------------------------

def _round_up(x: int, m: int) -> int:
    return ((x + m - 1) // m) * m


def _cdiv(a: int, b: int) -> int:
    return (a + b - 1) // b


def _pick_tile(dim: int, candidates) -> int:
    for c in candidates:
        if dim % c == 0:
            return c
    return dim


_WS_MAX_FP = 1024  # weight-stationary regime cap on the padded feature dim


def _vmem_limit_bytes() -> int:
    # Per-generation scoped-VMEM budget: 64 MiB on v5e/v6e (128 MiB physical),
    # 48 MiB on v7x (64 MiB physical).
    try:
        cap = int(pltpu.get_tpu_info().vmem_capacity_bytes)
    except Exception:
        cap = 128 * 1024 * 1024
    return min(64 * 1024 * 1024, (cap * 3) // 4)


def _mosaic_params(dimension_semantics):
    return pltpu.CompilerParams(
        dimension_semantics=dimension_semantics,
        vmem_limit_bytes=_vmem_limit_bytes(),
    )


# --------------------------- Pallas kernels ----------------------------------
# Weight-stationary regime: whole [Wr | Wi] (Fp, 2*Fp) plane resident in VMEM,
# single grid axis over M, direct output writes (no scratch, no accumulation).

def _real_x_ws_kernel(x_ref, wcat_ref, or_ref, oi_ref):
    fp = or_ref.shape[-1]
    res = jnp.dot(x_ref[...], wcat_ref[...], preferred_element_type=jnp.float32)
    or_ref[...] = res[:, :fp]     # x @ Wr
    oi_ref[...] = res[:, fp:]     # x @ Wi


def _complex_x_ws_kernel(xr_ref, xi_ref, wcat_ref, or_ref, oi_ref):
    fp = or_ref.shape[-1]
    w = wcat_ref[...]
    a = jnp.dot(xr_ref[...], w, preferred_element_type=jnp.float32)  # [Xr@Wr | Xr@Wi]
    b = jnp.dot(xi_ref[...], w, preferred_element_type=jnp.float32)  # [Xi@Wr | Xi@Wi]
    or_ref[...] = a[:, :fp] - b[:, fp:]   # Xr@Wr - Xi@Wi
    oi_ref[...] = a[:, fp:] + b[:, :fp]   # Xr@Wi + Xi@Wr


# Tiled regime (large F): (m, n, k) grid, k innermost, accumulate directly into
# the resident f32 output tiles (no VMEM scratch accumulators).

def _real_x_tiled_kernel(x_ref, wr_ref, wi_ref, or_ref, oi_ref):
    k = pl.program_id(2)

    @pl.when(k == 0)
    def _():
        or_ref[...] = jnp.zeros_like(or_ref)
        oi_ref[...] = jnp.zeros_like(oi_ref)

    x = x_ref[...]
    or_ref[...] += jnp.dot(x, wr_ref[...], preferred_element_type=jnp.float32)
    oi_ref[...] += jnp.dot(x, wi_ref[...], preferred_element_type=jnp.float32)


def _complex_x_tiled_kernel(xr_ref, xi_ref, wr_ref, wi_ref, or_ref, oi_ref):
    k = pl.program_id(2)

    @pl.when(k == 0)
    def _():
        or_ref[...] = jnp.zeros_like(or_ref)
        oi_ref[...] = jnp.zeros_like(oi_ref)

    xr = xr_ref[...]
    xi = xi_ref[...]
    wr = wr_ref[...]
    wi = wi_ref[...]
    or_ref[...] += (jnp.dot(xr, wr, preferred_element_type=jnp.float32)
                    - jnp.dot(xi, wi, preferred_element_type=jnp.float32))
    oi_ref[...] += (jnp.dot(xr, wi, preferred_element_type=jnp.float32)
                    + jnp.dot(xi, wr, preferred_element_type=jnp.float32))


# --------------------------- pallas_call wrappers -----------------------------

def _ws_matmul(x_planes, wcat, Fp, tm):
    """Weight-stationary complex matmul. x_planes = (xr,) or (xr, xi), each (M, Fp)."""
    M = x_planes[0].shape[0]
    n_x = len(x_planes)
    grid = (_cdiv(M, tm),)                                   # partial final block OK
    x_spec = pl.BlockSpec((tm, Fp), lambda m: (m, 0))
    w_spec = pl.BlockSpec((Fp, 2 * Fp), lambda m: (0, 0))    # constant index -> 1 fetch
    o_spec = pl.BlockSpec((tm, Fp), lambda m: (m, 0))
    kernel = _real_x_ws_kernel if n_x == 1 else _complex_x_ws_kernel
    itemsize = x_planes[0].dtype.itemsize
    cost = pl.CostEstimate(
        flops=2 * n_x * M * (2 * Fp) * Fp,
        transcendentals=0,
        bytes_accessed=(n_x * M * Fp + 2 * Fp * Fp) * itemsize + 2 * M * Fp * 4,
    )
    return pl.pallas_call(
        kernel,
        out_shape=(jax.ShapeDtypeStruct((M, Fp), jnp.float32),
                   jax.ShapeDtypeStruct((M, Fp), jnp.float32)),
        grid_spec=pltpu.PrefetchScalarGridSpec(
            num_scalar_prefetch=0,
            grid=grid,
            in_specs=[x_spec] * n_x + [w_spec],
            out_specs=(o_spec, o_spec),
        ),
        compiler_params=_mosaic_params(("parallel",)),
        cost_estimate=cost,
    )(*x_planes, wcat)


def _tiled_matmul(x_planes, wr, wi, Fp, tm, tn, tk):
    """Tiled complex matmul (large F): 4-matmul form, direct output accumulation."""
    M = x_planes[0].shape[0]
    n_x = len(x_planes)
    grid = (_cdiv(M, tm), Fp // tn, Fp // tk)
    x_spec = pl.BlockSpec((tm, tk), lambda m, n, k: (m, k))
    w_spec = pl.BlockSpec((tk, tn), lambda m, n, k: (k, n))  # independent of m
    o_spec = pl.BlockSpec((tm, tn), lambda m, n, k: (m, n))  # resident across k
    kernel = _real_x_tiled_kernel if n_x == 1 else _complex_x_tiled_kernel
    n_mm = 2 if n_x == 1 else 4
    itemsize = x_planes[0].dtype.itemsize
    cost = pl.CostEstimate(
        flops=2 * n_mm * M * Fp * Fp,
        transcendentals=0,
        bytes_accessed=(n_x * M * Fp + 2 * Fp * Fp * _cdiv(M, tm)) * itemsize
                       + 2 * M * Fp * 4,
    )
    return pl.pallas_call(
        kernel,
        out_shape=(jax.ShapeDtypeStruct((M, Fp), jnp.float32),
                   jax.ShapeDtypeStruct((M, Fp), jnp.float32)),
        grid_spec=pltpu.PrefetchScalarGridSpec(
            num_scalar_prefetch=0,
            grid=grid,
            in_specs=[x_spec] * n_x + [w_spec, w_spec],
            out_specs=(o_spec, o_spec),
        ),
        compiler_params=_mosaic_params(("parallel", "parallel", "arbitrary")),
        cost_estimate=cost,
    )(*x_planes, wr, wi)


# --------------------------- module wrapper -----------------------------------

class UnitaryComplexLinearWrapperPallas:
    """JAX/Pallas port of UnitaryComplexLinearWrapper."""

    def __init__(self, in_features: int, out_features: int, key, *,
                 use_bf16: bool = True, force_tiled: bool = False):
        assert in_features == out_features, (
            "in_features must equal out_features for unitarity."
        )
        self.in_features = in_features
        self.out_features = out_features
        # bf16 operands on the MXU (f32 accumulation) is the fast path on all
        # TPU generations; use_bf16=False keeps f32 operands (Mosaic's default
        # f32 matmul, empirically accurate to ~1e-3 vs complex64 reference).
        self._mm_dtype = jnp.bfloat16 if use_bf16 else jnp.float32

        k1, k2 = jax.random.split(key)
        # Deterministic synthetic parameters (mirrors torch.randn init shapes).
        self.weight_real = jax.random.normal(
            k1, (out_features, in_features), dtype=jnp.float32)
        self.weight_imag = jax.random.normal(
            k2, (out_features, in_features), dtype=jnp.float32)

        # ---- parameter-only preprocessing, cached (amortized across calls) ----
        # TODO(synk): complex Householder QR has no clean Pallas equivalent; plain JAX.
        w_complex = self.weight_real + 1j * self.weight_imag
        q, _ = jnp.linalg.qr(w_complex)          # (F, F) complex, unitary
        qh = jnp.conj(q).T                       # out = x @ Q^H

        F = in_features
        Fp = _round_up(F, 128)                   # lane-dense, MXU-friendly
        self._Fp = Fp
        pad = ((0, Fp - F), (0, Fp - F))
        wr = jnp.pad(jnp.real(qh).astype(jnp.float32), pad).astype(self._mm_dtype)
        wi = jnp.pad(jnp.imag(qh).astype(jnp.float32), pad).astype(self._mm_dtype)
        self._wr = wr
        self._wi = wi
        self._use_ws = (Fp <= _WS_MAX_FP) and not force_tiled
        # [Wr | Wi] concatenated along N: one wide MXU dot per x plane in the
        # weight-stationary kernels (fewer MXU issue/drain sequences).
        self._wcat = jnp.concatenate([wr, wi], axis=1) if self._use_ws else None

    def __call__(self, x):
        F, Fp = self.in_features, self._Fp
        batch_shape = x.shape[:-1]
        is_complex = jnp.iscomplexobj(x)

        if is_complex:
            raw_planes = [jnp.real(x), jnp.imag(x)]
        else:
            raw_planes = [x]

        def prep(p):
            p = p.reshape(-1, F).astype(self._mm_dtype)
            if Fp != F:
                # zero-pad the contraction dim only (weights are zero-padded too).
                p = jnp.pad(p, ((0, 0), (0, Fp - F)))
            return p

        planes = tuple(prep(p) for p in raw_planes)
        M = planes[0].shape[0]

        # tm selection: no M padding (cdiv grid handles a partial final block);
        # keep >= 2 parallel M blocks when possible so both v7x TCs get work.
        if self._use_ws:
            if M >= 512:
                tm = 256
            elif M >= 16:
                tm = _round_up(_cdiv(M, 2), 8)
            else:
                tm = M
            out_r, out_i = _ws_matmul(planes, self._wcat, Fp, tm)
        else:
            if M >= 512:
                tm = 512
            elif M >= 16:
                tm = _round_up(_cdiv(M, 2), 8)
            else:
                tm = M
            tn = _pick_tile(Fp, (512, 256, 128))
            tk = tn
            out_r, out_i = _tiled_matmul(planes, self._wr, self._wi, Fp, tm, tn, tk)

        out = jax.lax.complex(out_r[:, :F], out_i[:, :F])    # complex64
        return out.reshape(*batch_shape, F)


# --------------------------- reference & test ----------------------------------

def _reference_forward(x, weight_real, weight_imag):
    """Pure-JAX reference matching the PyTorch forward."""
    w_complex = weight_real + 1j * weight_imag
    q, _ = jnp.linalg.qr(w_complex)
    x_c = x.astype(jnp.complex64)
    return x_c @ jnp.conj(q).T


def _check(out, ref, shape):
    assert out.shape == shape, f"shape {out.shape} != {shape}"
    assert out.dtype == jnp.complex64
    err = float(jnp.max(jnp.abs(out - ref)))
    scale = max(1.0, float(jnp.max(jnp.abs(ref))))
    # Relative tolerance sized for bf16 MXU operands with f32 accumulation.
    assert err <= 2.5e-2 * scale, f"mismatch vs reference: err={err}, scale={scale}"


if __name__ == "__main__":
    key = jax.random.PRNGKey(0)
    k_param, k_x, k_xi = jax.random.split(key, 3)

    # ---- weight-stationary regime (F=32 -> Fp=128) ----
    batch, seq, hidden = 2, 8, 32
    model = UnitaryComplexLinearWrapperPallas(hidden, hidden, k_param)

    # Real input (the wrapper's documented path: x.to(complex64) with zero imag).
    x = jax.random.normal(k_x, (batch, seq, hidden), dtype=jnp.float32)
    out = jax.block_until_ready(model(x))
    ref = _reference_forward(x, model.weight_real, model.weight_imag)
    _check(out, ref, (batch, seq, hidden))

    # Complex input path.
    x_imag = jax.random.normal(k_xi, (batch, seq, hidden), dtype=jnp.float32)
    x_c = (x + 1j * x_imag).astype(jnp.complex64)
    out_c = jax.block_until_ready(model(x_c))
    ref_c = _reference_forward(x_c, model.weight_real, model.weight_imag)
    _check(out_c, ref_c, (batch, seq, hidden))

    # ---- tiled regime (forced, small shape) to exercise the large-F kernels ----
    hidden2 = 256
    model2 = UnitaryComplexLinearWrapperPallas(hidden2, hidden2, k_param,
                                               force_tiled=True)
    x2 = jax.random.normal(k_x, (batch, seq, hidden2), dtype=jnp.float32)
    out2 = jax.block_until_ready(model2(x2))
    ref2 = _reference_forward(x2, model2.weight_real, model2.weight_imag)
    _check(out2, ref2, (batch, seq, hidden2))

    x2_imag = jax.random.normal(k_xi, (batch, seq, hidden2), dtype=jnp.float32)
    x2_c = (x2 + 1j * x2_imag).astype(jnp.complex64)
    out2_c = jax.block_until_ready(model2(x2_c))
    ref2_c = _reference_forward(x2_c, model2.weight_real, model2.weight_imag)
    _check(out2_c, ref2_c, (batch, seq, hidden2))

    print("KERNEL_OK")
</pallas_src>

<mosaic_0001>
module attributes {stable_mosaic.version = 11 : i64} {
  func.func @_real_x_ws_kernel(%arg0: i32, %arg1: memref<8x128xbf16, #tpu.memory_space<vmem>>, %arg2: memref<128x256xbf16, #tpu.memory_space<vmem>>, %arg3: memref<8x128xf32, #tpu.memory_space<vmem>>, %arg4: memref<8x128xf32, #tpu.memory_space<vmem>>) attributes {dimension_semantics = [#tpu.dimension_semantics<parallel>], iteration_bounds = array<i64: 2>, scalar_prefetch = 0 : i64, scratch_operands = 0 : i64, tpu.core_type = #tpu.core_type<tc>, window_params = [{transform_indices = @transform_0, window_bounds = array<i64: 8, 128>}, {pipeline_mode = #tpu.pipeline_mode<synchronous>, transform_indices = @transform_1, window_bounds = array<i64: 128, 256>}, {transform_indices = @transform_2, window_bounds = array<i64: 8, 128>}, {transform_indices = @transform_3, window_bounds = array<i64: 8, 128>}]} {
    %c0 = arith.constant 0 : index
    %c0_0 = arith.constant 0 : index
    %0 = vector.load %arg1[%c0, %c0_0] : memref<8x128xbf16, #tpu.memory_space<vmem>>, vector<8x128xbf16>
    %c0_1 = arith.constant 0 : index
    %c0_2 = arith.constant 0 : index
    %1 = vector.load %arg2[%c0_1, %c0_2] : memref<128x256xbf16, #tpu.memory_space<vmem>>, vector<128x256xbf16>
    %cst = arith.constant dense<0.000000e+00> : vector<8x256xf32>
    %2 = tpu.matmul %0, %1, %cst {dimension_numbers = #tpu.dot_dimension_numbers<[1], [0], [0], [1], [0, 0, 1, 1], [], []>} : vector<8x128xbf16>, vector<128x256xbf16>, vector<8x256xf32> -> vector<8x256xf32>
    %3 = vector.extract_strided_slice %2 {offsets = [0, 0], sizes = [8, 128], strides = [1, 1]} : vector<8x256xf32> to vector<8x128xf32>
    %c0_3 = arith.constant 0 : index
    %c0_4 = arith.constant 0 : index
    %4 = vector.load %arg3[%c0_3, %c0_4] : memref<8x128xf32, #tpu.memory_space<vmem>>, vector<8x128xf32>
    tpu.vector_store %arg3[%c0_3, %c0_4], %3 {strides = array<i32>} : memref<8x128xf32, #tpu.memory_space<vmem>>, vector<8x128xf32>,
    %5 = vector.extract_strided_slice %2 {offsets = [0, 128], sizes = [8, 128], strides = [1, 1]} : vector<8x256xf32> to vector<8x128xf32>
    %c0_5 = arith.constant 0 : index
    %c0_6 = arith.constant 0 : index
    %6 = vector.load %arg4[%c0_5, %c0_6] : memref<8x128xf32, #tpu.memory_space<vmem>>, vector<8x128xf32>
    tpu.vector_store %arg4[%c0_5, %c0_6], %5 {strides = array<i32>} : memref<8x128xf32, #tpu.memory_space<vmem>>, vector<8x128xf32>,
    return
  }
  func.func @transform_0(%arg0: i32) -> (i32, i32) {
    %c0_i32 = arith.constant 0 : i32
    %c0_i32_0 = arith.constant 0 : i32
    return %arg0, %c0_i32 : i32, i32
  }
  func.func @transform_1(%arg0: i32) -> (i32, i32) {
    %c0_i32 = arith.constant 0 : i32
    %c0_i32_0 = arith.constant 0 : i32
    %c0_i32_1 = arith.constant 0 : i32
    return %c0_i32, %c0_i32_0 : i32, i32
  }
  func.func @transform_2(%arg0: i32) -> (i32, i32) {
    %c0_i32 = arith.constant 0 : i32
    %c0_i32_0 = arith.constant 0 : i32
    return %arg0, %c0_i32 : i32, i32
  }
  func.func @transform_3(%arg0: i32) -> (i32, i32) {
    %c0_i32 = arith.constant 0 : i32
    %c0_i32_0 = arith.constant 0 : i32
    return %arg0, %c0_i32 : i32, i32
  }
}

</mosaic_0001>

<llo_original>
// kernel: tpu_custom_call.1
$region0: #{tpu_custom_call.1}
  #allocation0 [shape = 'u32[]', space=smem, size = 0x4, offset = 0x4, fixed_abs, tag = 'smem constant byte address 0x4 - core index']
  #allocation1 [shape = 'u32[144,128]{1,0:T(1,128)}', space=vmem, size = 0x12000, scoped, tag = 'internal scratch']
  %s0 = inlined_call_operand.hbm [shape: bf16[16,128], index: 0, kind: input, shape index: {}]
  %s1 = inlined_call_operand.hbm [shape: bf16[128,256], index: 1, kind: input, shape index: {}]
  %s2 = inlined_call_operand.hbm [shape: f32[16,128], index: 2, kind: output, shape index: {0}]
  %s3 = inlined_call_operand.hbm [shape: f32[16,128], index: 3, kind: output, shape index: {1}]
  %4 = xla_tuple %s2, %s3
  %s5 = sld [smem:[#allocation0]]
  $region57: #{tpu_custom_call.1} parent=0
    _
  %s7 = ssub.s32 1, %s5
  %s8 = scalar_select 0, %s7, %s5
  $region1: #{tpu_custom_call.1} parent=0
    #allocation2 [shape = 'u8[4096]{0}', space=vmem, size = 0x1000, scoped, tag = 'input window, operand 0']
    #allocation3 [shape = 's32[2]{0}', space=sflag, size = 0x8, scoped, tag = 'scoped memory for tpu_custom_call.1']
    #allocation4 [shape = 's32[2]{0}', space=sflag, size = 0x8, scoped, tag = 'scoped memory for tpu_custom_call.1']
    #allocation5 [shape = 'u8[65536]{0}', space=vmem, size = 0x10000, scoped, tag = 'input window, operand 1, single buffered']
    #allocation6 [shape = 's32[1]{0}', space=sflag, size = 0x4, scoped, tag = 'scoped memory for tpu_custom_call.1']
    #allocation7 [shape = 'u8[8192]{0}', space=vmem, size = 0x2000, scoped, tag = 'output window, operand 0']
    #allocation8 [shape = 'u8[8192]{0}', space=vmem, size = 0x2000, scoped, tag = 'output window, operand 1']
    #allocation9 [shape = 's32[2]{0}', space=sflag, size = 0x8, scoped, tag = 'scoped memory for tpu_custom_call.1']
    %9 = vsyncpa [#allocation3], 0
    %s10 = scalar_lea.sflag [#allocation3], 1
    %11 = vsyncpa %s10, 0
    %12 = vsyncpa [#allocation6], 0
    %13 = vsyncpa [#allocation4], 0
    %s14 = scalar_lea.sflag [#allocation4], 1
    %15 = vsyncpa %s14, 0
    %16 = vsyncpa [#allocation9], 0
    %s17 = scalar_lea.sflag [#allocation9], 1
    %18 = vsyncpa %s17, 0
    loop: start=0, step=1, limit=4
    $region2: #{tpu_custom_call.1} parent=1 // loop_pre_header
      _
    $region3: #{tpu_custom_call.1} parent=1 // loop_header
      %s20 = sphi 0, %s24
      %p21 = scmp.ge.s32.totalorder %s20, 4
      %s30 = sphi 0, %s32
      %s33 = sphi 0, %s30
      %s34 = sphi 0, %s33
      %s50 = sphi 0, %s34
      %s54 = sphi 0, %s54
      %s56 = sphi 0, %s54
      %s57 = sphi 0, %s56
      %s71 = sphi 0, %s57
      %s77 = sphi 0, %s79
      %s80 = sphi 0, %s77
      %s81 = sphi 0, %s80
      %s97 = sphi 0, %s81
      %s103 = sphi 0, %s105
      %s106 = sphi 0, %s103
      %s107 = sphi 0, %s106
      %s123 = sphi 0, %s107
    $region4: #{tpu_custom_call.1} parent=1 // loop_header_branch
      %23 = sbr.rel (%p21) target = $region8
    $region5: #{tpu_custom_call.1} parent=1 // loop_body
      %s25 = ssub.s32 %s20, 1
      %s26 = ssub.s32 %s20, 2
      %s27 = sadd.s32 %s20, 1
      %s28 = ssub.s32 %s20, %s27
      %p29 = scmp.eq.s32.totalorder %s28, 0
      %s31 = sadd.s32 %s30, 1
      %s32 = scalar_select %p29, %s30, %s31
      %p35 = pneg %p29
      %p36 = scmp.eq.s32.totalorder %s20, 1
      %p37 = por %p35, %p36
      %p38 = scmp.ne.s32.totalorder %s30, %s33
      %p39 = scmp.eq.s32.totalorder %s20, 0
      %p40 = por %p38, %p39
      %p41 = scmp.ne.s32.totalorder %s30, %s33
      %p42 = scmp.eq.s32.totalorder %s25, 1
      %p43 = por %p41, %p42
      %p44 = scmp.ne.s32.totalorder %s33, %s34
      %p45 = scmp.eq.s32.totalorder %s25, 0
      %p46 = por %p44, %p45
      %p47 = scmp.ne.s32.totalorder %s33, %s34
      %p48 = scmp.eq.s32.totalorder %s26, 1
      %p49 = por %p47, %p48
      %p51 = scmp.ne.s32.totalorder %s34, %s50
      %p52 = scmp.eq.s32.totalorder %s26, 0
      %p53 = por %p51, %p52
      %s55 = sadd.s32 %s54, 1
      %p58 = scmp.eq.s32.totalorder %s20, 1
      %p59 = scmp.ne.s32.totalorder %s54, %s56
      %p60 = scmp.eq.s32.totalorder %s20, 0
      %p61 = por %p59, %p60
      %p62 = scmp.ne.s32.totalorder %s54, %s56
      %p63 = scmp.eq.s32.totalorder %s25, 1
      %p64 = por %p62, %p63
      %p65 = scmp.ne.s32.totalorder %s56, %s57
      %p66 = scmp.eq.s32.totalorder %s25, 0
      %p67 = por %p65, %p66
      %p68 = scmp.ne.s32.totalorder %s56, %s57
      %p69 = scmp.eq.s32.totalorder %s26, 1
      %p70 = por %p68, %p69
      %p72 = scmp.ne.s32.totalorder %s57, %s71
      %p73 = scmp.eq.s32.totalorder %s26, 0
      %p74 = por %p72, %p73
      %s75 = ssub.s32 %s20, %s27
      %p76 = scmp.eq.s32.totalorder %s75, 0
      %s78 = sadd.s32 %s77, 1
      %s79 = scalar_select %p76, %s77, %s78
      %p82 = pneg %p76
      %p83 = scmp.eq.s32.totalorder %s20, 1
      %p84 = por %p82, %p83
      %p85 = scmp.ne.s32.totalorder %s77, %s80
      %p86 = scmp.eq.s32.totalorder %s20, 0
      %p87 = por %p85, %p86
      %p88 = scmp.ne.s32.totalorder %s77, %s80
      %p89 = scmp.eq.s32.totalorder %s25, 1
      %p90 = por %p88, %p89
      %p91 = scmp.ne.s32.totalorder %s80, %s81
      %p92 = scmp.eq.s32.totalorder %s25, 0
      %p93 = por %p91, %p92
      %p94 = scmp.ne.s32.totalorder %s80, %s81
      %p95 = scmp.eq.s32.totalorder %s26, 1
      %p96 = por %p94, %p95
      %p98 = scmp.ne.s32.totalorder %s81, %s97
      %p99 = scmp.eq.s32.totalorder %s26, 0
      %p100 = por %p98, %p99
      %s101 = ssub.s32 %s20, %s27
      %p102 = scmp.eq.s32.totalorder %s101, 0
      %s104 = sadd.s32 %s103, 1
      %s105 = scalar_select %p102, %s103, %s104
      %p108 = pneg %p102
      %p109 = scmp.eq.s32.totalorder %s20, 1
      %p110 = por %p108, %p109
      %p111 = scmp.ne.s32.totalorder %s103, %s106
      %p112 = scmp.eq.s32.totalorder %s20, 0
      %p113 = por %p111, %p112
      %p114 = scmp.ne.s32.totalorder %s103, %s106
      %p115 = scmp.eq.s32.totalorder %s25, 1
      %p116 = por %p114, %p115
      %p117 = scmp.ne.s32.totalorder %s106, %s107
      %p118 = scmp.eq.s32.totalorder %s25, 0
      %p119 = por %p117, %p118
      %p120 = scmp.ne.s32.totalorder %s106, %s107
      %p121 = scmp.eq.s32.totalorder %s26, 1
      %p122 = por %p120, %p121
      %p124 = scmp.ne.s32.totalorder %s107, %s123
      %p125 = scmp.eq.s32.totalorder %s26, 0
      %p126 = por %p124, %p125
      %p127 = scmp.le.s32.totalorder 1, %s20
      %p128 = scmp.lt.s32.totalorder %s20, 3
      %p129 = pnand %p127, %p128
      %p130 = pneg %p129
      // Predicated region
      $region9: #{tpu_custom_call.1} parent=5 // pred_check
        _
      $region10: #{tpu_custom_call.1} parent=5 // pred_check_branch
        %132 = sbr.rel (%p129) target = $region12
      $region11: #{tpu_custom_call.1} parent=5 // pred_region
        %s133 = ssub.s32 %s20, 1
        // Predicated region
        $region13: #{tpu_custom_call.1} parent=11 // pred_check
          %p134 = pneg %p67
        $region14: #{tpu_custom_call.1} parent=11 // pred_check_branch
          %136 = sbr.rel (%p134) target = $region16
        $region15: #{tpu_custom_call.1} parent=11 // pred_region
          %s138 = ssub.s32 2048, 2048
          %139 = vsyncadd [#allocation6], %s138
          %s140 = sshll.u32 [#allocation5], 4
          %s141 = int_to_ptr.vmem [resolvable:$true] %s140
          %146 = dma.hbm_to_vmem [thread:$0]  %s1, 2048, %s141, [#allocation6], 128, 128, 8
        $region16: #{tpu_custom_call.1} parent=11 // pred_fallthru
          _
      $region12: #{tpu_custom_call.1} parent=5 // pred_fallthru
        _
      %p147 = scmp.lt.s32.totalorder %s20, 2
      // Predicated region
      $region17: #{tpu_custom_call.1} parent=5 // pred_check
        %p148 = pneg %p147
      $region18: #{tpu_custom_call.1} parent=5 // pred_check_branch
        %150 = sbr.rel (%p148) target = $region20
      $region19: #{tpu_custom_call.1} parent=5 // pred_region
        // Predicated region
        $region21: #{tpu_custom_call.1} parent=19 // pred_check
          %p151 = pneg %p40
        $region22: #{tpu_custom_call.1} parent=19 // pred_check_branch
          %153 = sbr.rel (%p151) target = $region24
        $region23: #{tpu_custom_call.1} parent=19 // pred_region
          %s154 = sand.u32 %s30, 1
          %s155 = scalar_lea.sflag [#allocation3], %s154
          %s156 = sand.u32 %s30, 1
          %s157 = smul.addr %s156, 4
          %s158 = scalar_lea.vmem [#allocation2], %s157
          %s160 = ssub.s32 64, 64
          %161 = vsyncadd %s155, %s160
          %s162 = smul.addr %s20, 64
          %s163 = scalar_lea.hbm %s0, %s162
          %s165 = sshll.u32 %s158, 4
          %s166 = int_to_ptr.vmem [resolvable:$true] %s165
          %168 = dma.hbm_to_vmem [thread:$0]  %s163, 64, %s166, %s155
        $region24: #{tpu_custom_call.1} parent=19 // pred_fallthru
          _
      $region20: #{tpu_custom_call.1} parent=5 // pred_fallthru
        _
      %p169 = scmp.le.s32.totalorder 1, %s20
      %p170 = scmp.lt.s32.totalorder %s20, 3
      %p171 = pnand %p169, %p170
      %p172 = pneg %p171
      // Predicated region
      $region25: #{tpu_custom_call.1} parent=5 // pred_check
        _
      $region26: #{tpu_custom_call.1} parent=5 // pred_check_branch
        %174 = sbr.rel (%p171) target = $region28
      $region27: #{tpu_custom_call.1} parent=5 // pred_region
        %s175 = ssub.s32 %s20, 1
        %s176 = sand.u32 %s33, 1
        %s177 = scalar_lea.sflag [#allocation3], %s176
        %s178 = sand.u32 %s33, 1
        %s179 = smul.addr %s178, 4
        %s180 = scalar_lea.vmem [#allocation2], %s179
        // Predicated region
        $region29: #{tpu_custom_call.1} parent=27 // pred_check
          %p181 = pneg %p46
        $region30: #{tpu_custom_call.1} parent=27 // pred_check_branch
          %183 = sbr.rel (%p181) target = $region32
        $region31: #{tpu_custom_call.1} parent=27 // pred_region
          %184 = dma.done %s177, 64
        $region32: #{tpu_custom_call.1} parent=27 // pred_fallthru
          _
        // Predicated region
        $region33: #{tpu_custom_call.1} parent=27 // pred_check
          %p185 = pneg %p67
        $region34: #{tpu_custom_call.1} parent=27 // pred_check_branch
          %187 = sbr.rel (%p185) target = $region36
        $region35: #{tpu_custom_call.1} parent=27 // pred_region
          %188 = dma.done [#allocation6], 2048
        $region36: #{tpu_custom_call.1} parent=27 // pred_fallthru
          _
        %s189 = sand.u32 %s33, 1
        %s190 = scalar_lea.sflag [#allocation3], %s189
        %s191 = sand.u32 %s33, 1
        %s192 = smul.addr %s191, 4
        %s193 = scalar_lea.vmem [#allocation2], %s192
        %p194 = pneg %p46
        %p195 = pneg %p43
        %p196 = pneg %p67
        %p197 = pneg %p64
        %p198 = pneg %p93
        %p199 = pneg %p90
        %s200 = sand.u32 %s80, 1
        %s201 = scalar_lea.sflag [#allocation4], %s200
        %s202 = sand.u32 %s80, 1
        %s203 = smul.addr %s202, 8
        %s204 = scalar_lea.vmem [#allocation7], %s203
        %p205 = pneg %p119
        %p206 = pneg %p116
        %s207 = sand.u32 %s106, 1
        %s208 = scalar_lea.sflag [#allocation9], %s207
        %s209 = sand.u32 %s106, 1
        %s210 = smul.addr %s209, 8
        %s211 = scalar_lea.vmem [#allocation8], %s210
        %v213 = vld [vmem:[%s180] sm:$0xf]
        %v214 = vld [vmem:[#allocation5] sm:$0xff]
        %v215 = vld [vmem:[#allocation5 + $0x8] sm:$0xff]
        %v216 = vld [vmem:[#allocation5 + $0x10] sm:$0xff]
        %v217 = vld [vmem:[#allocation5 + $0x18] sm:$0xff]
        %v218 = vld [vmem:[#allocation5 + $0x20] sm:$0xff]
        %v219 = vld [vmem:[#allocation5 + $0x28] sm:$0xff]
        %v220 = vld [vmem:[#allocation5 + $0x30] sm:$0xff]
        %v221 = vld [vmem:[#allocation5 + $0x38] sm:$0xff]
        %v222 = vld [vmem:[#allocation5 + $0x40] sm:$0xff]
        %v223 = vld [vmem:[#allocation5 + $0x48] sm:$0xff]
        %v224 = vld [vmem:[#allocation5 + $0x50] sm:$0xff]
        %v225 = vld [vmem:[#allocation5 + $0x58] sm:$0xff]
        %v226 = vld [vmem:[#allocation5 + $0x60] sm:$0xff]
        %v227 = vld [vmem:[#allocation5 + $0x68] sm:$0xff]
        %v228 = vld [vmem:[#allocation5 + $0x70] sm:$0xff]
        %v229 = vld [vmem:[#allocation5 + $0x78] sm:$0xff]
        %v246 = vunpack.c.l.b16 %v214
        %v247 = vunpack.c.h.b16 %v214
        %v248 = vunpack.c.l.b16 %v215
        %v249 = vunpack.c.h.b16 %v215
        %v250 = vunpack.c.l.b16 %v216
        %v251 = vunpack.c.h.b16 %v216
        %v252 = vunpack.c.l.b16 %v217
        %v253 = vunpack.c.h.b16 %v217
        %v254 = vunpack.c.l.b16 %v218
        %v255 = vunpack.c.h.b16 %v218
        %v256 = vunpack.c.l.b16 %v219
        %v257 = vunpack.c.h.b16 %v219
        %v258 = vunpack.c.l.b16 %v220
        %v259 = vunpack.c.h.b16 %v220
        %v260 = vunpack.c.l.b16 %v221
        %v261 = vunpack.c.h.b16 %v221
        %v262 = vunpack.c.l.b16 %v222
        %v263 = vunpack.c.h.b16 %v222
        %v264 = vunpack.c.l.b16 %v223
        %v265 = vunpack.c.h.b16 %v223
        %v266 = vunpack.c.l.b16 %v224
        %v267 = vunpack.c.h.b16 %v224
        %v268 = vunpack.c.l.b16 %v225
        %v269 = vunpack.c.h.b16 %v225
        %v270 = vunpack.c.l.b16 %v226
        %v271 = vunpack.c.h.b16 %v226
        %v272 = vunpack.c.l.b16 %v227
        %v273 = vunpack.c.h.b16 %v227
        %v274 = vunpack.c.l.b16 %v228
        %v275 = vunpack.c.h.b16 %v228
        %v276 = vunpack.c.l.b16 %v229
        %v277 = vunpack.c.h.b16 %v229
        %v278 = vpack.c.b16 %v248, %v246
        %v279 = vpack.c.b16 %v249, %v247
        %v280 = vpack.c.b16 %v252, %v250
        %v281 = vpack.c.b16 %v253, %v251
        %v282 = vpack.c.b16 %v256, %v254
        %v283 = vpack.c.b16 %v257, %v255
        %v284 = vpack.c.b16 %v260, %v258
        %v285 = vpack.c.b16 %v261, %v259
        %v286 = vpack.c.b16 %v264, %v262
        %v287 = vpack.c.b16 %v265, %v263
        %v288 = vpack.c.b16 %v268, %v266
        %v289 = vpack.c.b16 %v269, %v267
        %v290 = vpack.c.b16 %v272, %v270
        %v291 = vpack.c.b16 %v273, %v271
        %v292 = vpack.c.b16 %v276, %v274
        %v293 = vpack.c.b16 %v277, %v275
        %310 = vmatprep.subr.bf16.mxu0 %v279
        %311 = vmatpush1.bf16.msra.mxu0 %v278
        %312 = vmatprep.subr.bf16.mxu0 %v281
        %313 = vmatpush1.bf16.msra.mxu0 %v280
        %314 = vmatprep.subr.bf16.mxu0 %v283
        %315 = vmatpush1.bf16.msra.mxu0 %v282
        %316 = vmatprep.subr.bf16.mxu0 %v285
        %317 = vmatpush1.bf16.msra.mxu0 %v284
        %318 = vmatprep.subr.bf16.mxu0 %v287
        %319 = vmatpush1.bf16.msra.mxu0 %v286
        %320 = vmatprep.subr.bf16.mxu0 %v289
        %321 = vmatpush1.bf16.msra.mxu0 %v288
        %322 = vmatprep.subr.bf16.mxu0 %v291
        %323 = vmatpush1.bf16.msra.mxu0 %v290
        %324 = vmatprep.subr.bf16.mxu0 %v293
        %325 = vmatpush1.bf16.msra.mxu0 %v292
        %326 = vmatprep.subr.bf16.mxu0 0
        %327 = vmatpush1.bf16.msra.mxu0 0
        %328 = vmatprep.subr.bf16.mxu0 0
        %329 = vmatpush1.bf16.msra.mxu0 0
        %330 = vmatprep.subr.bf16.mxu0 0
        %331 = vmatpush1.bf16.msra.mxu0 0
        %332 = vmatprep.subr.bf16.mxu0 0
        %333 = vmatpush1.bf16.msra.mxu0 0
        %334 = vmatprep.subr.bf16.mxu0 0
        %335 = vmatpush1.bf16.msra.mxu0 0
        %336 = vmatprep.subr.bf16.mxu0 0
        %337 = vmatpush1.bf16.msra.mxu0 0
        %338 = vmatprep.subr.bf16.mxu0 0
        %339 = vmatpush1.bf16.msra.mxu0 0
        %340 = vmatprep.subr.bf16.mxu0 0
        %341 = vmatpush1.bf16.msra.mxu0 0
        %342 = vmatprep.mubr.bf16.mxu0 0
        %343 = vmatmul.mubr.bf16.gmra.mrb[0].mxu0 %v213
        %v344 = vpop.f32.mrb[0].mxu0
        %v345 = vadd.f32 0.0, %v344
        %v346 = vpop.f32.mrb[0].mxu0
        %v347 = vadd.f32 0.0, %v346
        %v348 = vpop.f32.mrb[0].mxu0
        %v349 = vpop.f32.mrb[0].mxu0
        %350 = vdwg.mxu0
        %351 = vst [vmem:[%s204] sm:$0xff] %v345
        %352 = vst [vmem:[%s211] sm:$0xff] %v347
        %s353 = sand.u32 %s80, 1
        %s354 = scalar_lea.sflag [#allocation4], %s353
        %s355 = sand.u32 %s80, 1
        %s356 = smul.addr %s355, 8
        %s357 = scalar_lea.vmem [#allocation7], %s356
        %s358 = sand.u32 %s106, 1
        %s359 = scalar_lea.sflag [#allocation9], %s358
        %s360 = sand.u32 %s106, 1
        %s361 = smul.addr %s360, 8
        %s362 = scalar_lea.vmem [#allocation8], %s361
        // Predicated region
        $region37: #{tpu_custom_call.1} parent=27 // pred_check
          %p363 = pneg %p90
        $region38: #{tpu_custom_call.1} parent=27 // pred_check_branch
          %365 = sbr.rel (%p363) target = $region40
        $region39: #{tpu_custom_call.1} parent=27 // pred_region
          %s367 = ssub.s32 128, 128
          %368 = vsyncadd %s354, %s367
          %s369 = smul.addr %s25, 128
          %s370 = scalar_lea.hbm %s2, %s369
          %s372 = sshll.u32 %s357, 4
          %s373 = int_to_ptr.vmem [resolvable:$true] %s372
          %375 = dma.vmem_to_hbm [thread:$0]  %s373, 128, %s370, %s354
        $region40: #{tpu_custom_call.1} parent=27 // pred_fallthru
          _
        // Predicated region
        $region41: #{tpu_custom_call.1} parent=27 // pred_check
          %p376 = pneg %p116
        $region42: #{tpu_custom_call.1} parent=27 // pred_check_branch
          %378 = sbr.rel (%p376) target = $region44
        $region43: #{tpu_custom_call.1} parent=27 // pred_region
          %s380 = ssub.s32 128, 128
          %381 = vsyncadd %s359, %s380
          %s382 = smul.addr %s25, 128
          %s383 = scalar_lea.hbm %s3, %s382
          %s385 = sshll.u32 %s362, 4
          %s386 = int_to_ptr.vmem [resolvable:$true] %s385
          %388 = dma.vmem_to_hbm [thread:$0]  %s386, 128, %s383, %s359
        $region44: #{tpu_custom_call.1} parent=27 // pred_fallthru
          _
      $region28: #{tpu_custom_call.1} parent=5 // pred_fallthru
        _
      %p389 = scmp.le.s32.totalorder 2, %s20
      // Predicated region
      $region45: #{tpu_custom_call.1} parent=5 // pred_check
        %p390 = pneg %p389
      $region46: #{tpu_custom_call.1} parent=5 // pred_check_branch
        %392 = sbr.rel (%p390) target = $region48
      $region47: #{tpu_custom_call.1} parent=5 // pred_region
        %s393 = ssub.s32 %s20, 2
        // Predicated region
        $region49: #{tpu_custom_call.1} parent=47 // pred_check
          %p394 = pneg %p96
        $region50: #{tpu_custom_call.1} parent=47 // pred_check_branch
          %396 = sbr.rel (%p394) target = $region52
        $region51: #{tpu_custom_call.1} parent=47 // pred_region
          %s397 = sand.u32 %s81, 1
          %s398 = scalar_lea.sflag [#allocation4], %s397
          %s399 = sand.u32 %s81, 1
          %s400 = smul.addr %s399, 8
          %s401 = scalar_lea.vmem [#allocation7], %s400
          %402 = dma.done %s398, 128
        $region52: #{tpu_custom_call.1} parent=47 // pred_fallthru
          _
        // Predicated region
        $region53: #{tpu_custom_call.1} parent=47 // pred_check
          %p403 = pneg %p122
        $region54: #{tpu_custom_call.1} parent=47 // pred_check_branch
          %405 = sbr.rel (%p403) target = $region56
        $region55: #{tpu_custom_call.1} parent=47 // pred_region
          %s406 = sand.u32 %s107, 1
          %s407 = scalar_lea.sflag [#allocation9], %s406
          %s408 = sand.u32 %s107, 1
          %s409 = smul.addr %s408, 8
          %s410 = scalar_lea.vmem [#allocation8], %s409
          %411 = dma.done %s407, 128
        $region56: #{tpu_custom_call.1} parent=47 // pred_fallthru
          _
      $region48: #{tpu_custom_call.1} parent=5 // pred_fallthru
        _
    $region6: #{tpu_custom_call.1} parent=1 // loop_footer
      %s24 = sadd.s32 1, %s20
    $region7: #{tpu_custom_call.1} parent=1 // loop_footer_branch
      %19 = sbr.rel target = $region3
    $region8: #{tpu_custom_call.1} parent=1 // loop_exit
      _
    %412 = vsyncpa [#allocation3], 1
    %s413 = scalar_lea.sflag [#allocation3], 1
    %414 = vsyncpa %s413, 1
    %415 = vsyncpa [#allocation6], 1
    %416 = vsyncpa [#allocation4], 1
    %s417 = scalar_lea.sflag [#allocation4], 1
    %418 = vsyncpa %s417, 1
    %419 = vsyncpa [#allocation9], 1
    %s420 = scalar_lea.sflag [#allocation9], 1
    %421 = vsyncpa %s420, 1

</llo_original>
